<compile_context>
chip_gen: v6e
topology: v6e:2x2x1
jax: 0.10.0
libtpu: 0.0.40
codegen_flags: <defaults>
</compile_context>

<pallas_src>
import functools
import math

import numpy as np
import jax
import jax.numpy as jnp
from jax.experimental import pallas as pl
from jax.experimental.pallas import tpu as pltpu


def _round_up(x, m):
    return ((x + m - 1) // m) * m


# ---------------------------------------------------------------------------
# Pallas kernels
# ---------------------------------------------------------------------------
def _istft_frames_kernel(cs_ref, x_ref, out_ref):
    """Single fused iDFT matmul: out = CSw @ [Re(X); Im(X)] (window folded in)."""
    out_ref[...] = jnp.dot(cs_ref[...], x_ref[...],
                           preferred_element_type=jnp.float32)


def _l1snr_kernel(eps, total_len, needs_mask,
                  xin_ref, xtgt_ref, loss_ref, num_acc, den_acc):
    """Streamed per-row L1-SNR.

    Per length tile: accumulate per-lane partials of |x_in - x_tgt| and |x_tgt|
    (elementwise VALU adds). Finalize on the last tile with one cross-lane
    reduce and 10*(log10(num+eps) - log10(den+eps))."""
    k = pl.program_id(0)

    @pl.when(k == 0)
    def _():
        num_acc[...] = jnp.zeros_like(num_acc)
        den_acc[...] = jnp.zeros_like(den_acc)

    xin = xin_ref[...]
    xtgt = xtgt_ref[...]
    if needs_mask:
        # Mask the padded tail of the last tile (robust to OOB block contents).
        tl = xin_ref.shape[-1]
        col = jax.lax.broadcasted_iota(jnp.int32, xin_ref.shape, 1) + k * tl
        valid = col < total_len
        xin = jnp.where(valid, xin, 0.0)
        xtgt = jnp.where(valid, xtgt, 0.0)

    num_acc[...] += jnp.abs(xin - xtgt)
    den_acc[...] += jnp.abs(xtgt)

    @pl.when(k == pl.num_programs(0) - 1)
    def _():
        num = jnp.sum(num_acc[...], axis=-1, keepdims=True)
        den = jnp.sum(den_acc[...], axis=-1, keepdims=True)
        loss_ref[...] = 10.0 * (jnp.log10(num + eps) - jnp.log10(den + eps))


# ---------------------------------------------------------------------------
# Pallas wrappers
# ---------------------------------------------------------------------------
def istft_frames_pallas(x_stacked, cs, *, tn_max=512):
    """x_stacked: (2*n_bins, B*n_frames) bf16, cs: (n_fft, K_pad) bf16 with the
    synthesis window folded in. Returns windowed frames (n_fft, B*n_frames) f32."""
    K, ncols = x_stacked.shape
    n_fft, Kp = cs.shape

    # Lane-dense tiling of the frame axis (unmasked stores).
    if ncols <= tn_max:
        tn = _round_up(ncols, 128)
    else:
        tn = tn_max  # multiple of 128
    ncols_pad = _round_up(ncols, tn)

    if (Kp > K) or (ncols_pad > ncols):
        x_stacked = jnp.pad(x_stacked, ((0, Kp - K), (0, ncols_pad - ncols)))

    grid = (ncols_pad // tn,)
    out = pl.pallas_call(
        _istft_frames_kernel,
        out_shape=jax.ShapeDtypeStruct((n_fft, ncols_pad), jnp.float32),
        grid=grid,
        in_specs=[
            # Same block index every step -> fetched once, resident in VMEM.
            pl.BlockSpec((n_fft, Kp), lambda j: (0, 0)),
            pl.BlockSpec((Kp, tn), lambda j: (0, j)),
        ],
        out_specs=pl.BlockSpec((n_fft, tn), lambda j: (0, j)),
        compiler_params=pltpu.CompilerParams(
            dimension_semantics=("parallel",),
            vmem_limit_bytes=48 * 1024 * 1024),
    )(cs, x_stacked)
    if ncols_pad > ncols:
        out = out[:, :ncols]
    return out


def l1snr_pallas(x_in, x_tgt, eps):
    """x_in, x_tgt: (N, L) float32 -> (N, 1) float32 per-row loss."""
    n_rows, L = x_in.shape
    tl = L if L <= 4096 else 2048  # stream long waveforms in 2048-lane tiles
    grid = (pl.cdiv(L, tl),)
    needs_mask = (L % tl) != 0
    kernel = functools.partial(_l1snr_kernel, float(eps), int(L), needs_mask)
    return pl.pallas_call(
        kernel,
        out_shape=jax.ShapeDtypeStruct((n_rows, 1), jnp.float32),
        grid=grid,
        in_specs=[pl.BlockSpec((n_rows, tl), lambda k: (0, k)),
                  pl.BlockSpec((n_rows, tl), lambda k: (0, k))],
        out_specs=pl.BlockSpec((n_rows, 1), lambda k: (0, 0)),
        scratch_shapes=[pltpu.VMEM((n_rows, tl), jnp.float32),
                        pltpu.VMEM((n_rows, tl), jnp.float32)],
        compiler_params=pltpu.CompilerParams(
            dimension_semantics=("arbitrary",),
            vmem_limit_bytes=48 * 1024 * 1024),
    )(x_in, x_tgt)


# ---------------------------------------------------------------------------
# Host-side helpers
# ---------------------------------------------------------------------------
def _overlap_add(frames, hop):
    """frames: (B, n_fft, n_frames) -> (B, n_fft + hop*(n_frames-1)).
    Scatter-free (pad+add per overlap shift) when hop divides n_fft."""
    B, n_fft, n_frames = frames.shape
    total = n_fft + hop * (n_frames - 1)
    if n_fft % hop == 0:
        R = n_fft // hop
        n_slots = n_frames + R - 1
        fr = frames.reshape(B, R, hop, n_frames)
        y = jnp.zeros((B, n_slots, hop), frames.dtype)
        for j in range(R):
            chunk = jnp.transpose(fr[:, j], (0, 2, 1))  # (B, n_frames, hop)
            y = y + jnp.pad(chunk, ((0, 0), (j, R - 1 - j), (0, 0)))
        return y.reshape(B, n_slots * hop)
    # TODO(synk): general hop (not dividing n_fft) falls back to XLA scatter-add.
    idx = (jnp.arange(n_frames)[:, None] * hop
           + jnp.arange(n_fft)[None, :]).reshape(-1)
    vals = jnp.transpose(frames, (0, 2, 1)).reshape(B, -1)
    return jnp.zeros((B, total), frames.dtype).at[:, idx].add(vals)


def _build_windowed_idft(n_fft, normalized, window_np):
    """[window*C | window*S] with C/S the real/imag onesided inverse-rDFT so that
    window * irfft(X) = CSw @ [Re(X); Im(X)]."""
    n_bins = n_fft // 2 + 1
    n = np.arange(n_fft)[:, None].astype(np.float64)
    k = np.arange(n_bins)[None, :].astype(np.float64)
    coef = np.full((1, n_bins), 2.0)
    coef[0, 0] = 1.0
    if n_fft % 2 == 0:
        coef[0, -1] = 1.0
    ang = 2.0 * np.pi * n * k / n_fft
    scale = (math.sqrt(n_fft) if normalized else 1.0) / n_fft
    C = (coef * np.cos(ang)) * scale
    S = (-coef * np.sin(ang)) * scale
    w = window_np[:, None]
    return np.concatenate([w * C, w * S], axis=1)  # (n_fft, 2*n_bins)


# ---------------------------------------------------------------------------
# Module
# ---------------------------------------------------------------------------
class WaveformL1SNRPallas:
    def __init__(self, n_fft, hop_length=None, win_length=None, window=None,
                 center=True, normalized=False, onesided=None, length=None,
                 return_complex=False, reduction="mean", eps=1e-8,
                 compute_dtype=jnp.bfloat16):
        self.n_fft = n_fft
        self.hop_length = hop_length if hop_length is not None else n_fft // 4
        self.win_length = win_length if win_length is not None else n_fft
        self.center = center
        self.normalized = normalized
        self.onesided = onesided
        self.length = length
        self.return_complex = return_complex
        self.reduction = reduction
        self.eps = eps
        self.compute_dtype = compute_dtype

        assert onesided in (None, True), "only onesided iSTFT is implemented"
        # TODO(synk): onesided=False (full-spectrum) iSTFT not implemented.
        assert length is None, "length argument not implemented"
        # TODO(synk): explicit `length` trimming/zero-padding not implemented.

        if window is None:
            window_np = np.ones((self.win_length,), np.float64)
        else:
            window_np = np.asarray(jax.device_get(window), np.float64)
        # center-pad window to n_fft (torch.istft behavior)
        if self.win_length < n_fft:
            left = (n_fft - self.win_length) // 2
            right = n_fft - self.win_length - left
            window_np = np.pad(window_np, (left, right))
        self._window_np = window_np
        self.window = jnp.asarray(window_np, jnp.float32)

        # Window folded into the iDFT matrices; bf16 for native MXU input.
        # Pad the contraction dim K = 2*n_bins to a multiple of 16 (bf16 sublane
        # packing); padded columns are zero so the matmul is unchanged.
        csw_np = _build_windowed_idft(n_fft, normalized, window_np)
        k_pad = _round_up(csw_np.shape[1], 16)
        csw_np = np.pad(csw_np, ((0, 0), (0, k_pad - csw_np.shape[1])))
        self.CSw = jnp.asarray(csw_np, compute_dtype)
        self._env_cache = {}

    # -- host-side constant: inverse of the squared-window OLA envelope -------
    def _inv_envelope(self, n_frames):
        if n_frames not in self._env_cache:
            w2 = self._window_np ** 2
            total = self.n_fft + self.hop_length * (n_frames - 1)
            env = np.zeros(total, np.float64)
            for t in range(n_frames):
                env[t * self.hop_length: t * self.hop_length + self.n_fft] += w2
            if self.center:
                half = self.n_fft // 2
                env = env[half: total - half]
            if env.min() < 1e-11:
                raise RuntimeError(
                    "window overlap-add envelope is ~0; istft is not invertible "
                    "(mirrors torch.istft COLA check)")
            self._env_cache[n_frames] = jnp.asarray(1.0 / env, jnp.float32)
        return self._env_cache[n_frames]

    # -- iSTFT -----------------------------------------------------------------
    def _istft(self, spec):
        *batch_shape, n_bins, n_frames = spec.shape
        spec = spec.reshape(-1, n_bins, n_frames)
        B = spec.shape[0]
        xr = jnp.real(spec).astype(jnp.float32)
        xi = jnp.imag(spec).astype(jnp.float32)

        # Stack Re/Im along K and flatten batch into the (lane-dense) frame axis.
        x = jnp.concatenate([xr, xi], axis=1)                     # (B, 2*n_bins, T)
        x = jnp.transpose(x, (1, 0, 2)).reshape(2 * n_bins, B * n_frames)
        x = x.astype(self.compute_dtype)

        y_flat = istft_frames_pallas(x, self.CSw)                 # (n_fft, B*T) f32
        frames = jnp.transpose(
            y_flat.reshape(self.n_fft, B, n_frames), (1, 0, 2))   # (B, n_fft, T)

        y = _overlap_add(frames, self.hop_length)                 # (B, total)
        if self.center:
            half = self.n_fft // 2
            y = y[:, half: y.shape[1] - half]
        y = y * self._inv_envelope(n_frames)[None, :]
        return y.reshape(*batch_shape, -1)

    # -- loss -------------------------------------------------------------------
    def forward(self, input_spec, target_spec):
        x_in = self._istft(input_spec)
        x_tgt = self._istft(target_spec)

        batch_shape = x_in.shape[:-1]
        L = x_in.shape[-1]
        loss = l1snr_pallas(x_in.reshape(-1, L), x_tgt.reshape(-1, L), self.eps)
        loss = loss.reshape(batch_shape)

        if self.reduction == "mean":
            loss = loss.mean()
        elif self.reduction == "sum":
            loss = loss.sum()
        elif self.reduction == "none":
            pass
        else:
            raise ValueError(f"Invalid reduction {self.reduction} is found.")
        return loss

    __call__ = forward


# ---------------------------------------------------------------------------
# Pure-JAX reference (independent path: irfft + scatter overlap-add, f32)
# ---------------------------------------------------------------------------
def _overlap_add_ref(frames, hop):
    B, n_fft, n_frames = frames.shape
    total = n_fft + hop * (n_frames - 1)
    idx = (jnp.arange(n_frames)[:, None] * hop
           + jnp.arange(n_fft)[None, :]).reshape(-1)
    vals = jnp.transpose(frames, (0, 2, 1)).reshape(B, -1)
    return jnp.zeros((B, total), frames.dtype).at[:, idx].add(vals)


def _ref_istft(spec, n_fft, hop, window, center):
    *bs, n_bins, n_frames = spec.shape
    spec = spec.reshape(-1, n_bins, n_frames)
    frames = jnp.fft.irfft(jnp.transpose(spec, (0, 2, 1)), n=n_fft, axis=-1)
    frames = frames * window[None, None, :]
    frames = jnp.transpose(frames, (0, 2, 1))
    y = _overlap_add_ref(frames.astype(jnp.float32), hop)
    env = _overlap_add_ref(jnp.broadcast_to((window ** 2)[None, :, None],
                                            (1, n_fft, n_frames)), hop)[0]
    if center:
        half = n_fft // 2
        y = y[:, half:y.shape[1] - half]
        env = env[half:env.shape[0] - half]
    y = y / env
    return y.reshape(*bs, -1)


def _ref_loss(spec_in, spec_tgt, n_fft, hop, window, center, eps):
    xi = _ref_istft(spec_in, n_fft, hop, window, center)
    xt = _ref_istft(spec_tgt, n_fft, hop, window, center)
    num = jnp.abs(xi - xt).sum(axis=-1)
    den = jnp.abs(xt).sum(axis=-1)
    return (10.0 * (jnp.log10(num + eps) - jnp.log10(den + eps))).mean()


# ---------------------------------------------------------------------------
if __name__ == "__main__":
    n_fft, hop, win = 16, 4, 16
    n_bins, n_frames = n_fft // 2 + 1, 8

    # deterministic periodic Hann window (the module's registered buffer)
    window = jnp.asarray(0.5 - 0.5 * np.cos(2.0 * np.pi * np.arange(win) / win),
                         jnp.float32)

    mod = WaveformL1SNRPallas(n_fft, hop_length=hop, win_length=win,
                              window=window, center=True, normalized=False,
                              reduction="mean", eps=1e-8)

    key = jax.random.PRNGKey(0)
    k1, k2, k3, k4 = jax.random.split(key, 4)
    shape = (2, 3, n_bins, n_frames)   # (batch, sources, n_bins, n_frames)

    def make_spec(kr, ki):
        re = jax.random.normal(kr, shape, jnp.float32)
        im = jax.random.normal(ki, shape, jnp.float32)
        # keep DC / Nyquist bins purely real (Hermitian-consistent onesided spec)
        im = im.at[..., 0, :].set(0.0).at[..., -1, :].set(0.0)
        return re + 1j * im

    spec_in = make_spec(k1, k2)
    spec_tgt = make_spec(k3, k4)

    loss = mod(spec_in, spec_tgt)
    loss = jax.block_until_ready(loss)

    loss_ref = _ref_loss(spec_in, spec_tgt, n_fft, hop, mod.window, True, mod.eps)
    loss_ref = jax.block_until_ready(loss_ref)

    # Tolerance accounts for bf16 MXU inputs vs. the pure-f32 fft reference
    # (dB-scale metric; observed error is well below this bound).
    np.testing.assert_allclose(np.asarray(loss), np.asarray(loss_ref),
                               rtol=5e-2, atol=5e-2)
    print("KERNEL_OK")
</pallas_src>

<mosaic_0001>
module attributes {stable_mosaic.version = 11 : i64} {
  func.func @_istft_frames_kernel(%arg0: i32, %arg1: memref<16x32xbf16, #tpu.memory_space<vmem>>, %arg2: memref<32x128xbf16, #tpu.memory_space<vmem>>, %arg3: memref<16x128xf32, #tpu.memory_space<vmem>>) attributes {dimension_semantics = [#tpu.dimension_semantics<parallel>], iteration_bounds = array<i64: 1>, scalar_prefetch = 0 : i64, scratch_operands = 0 : i64, tpu.core_type = #tpu.core_type<tc>, window_params = [{pipeline_mode = #tpu.pipeline_mode<synchronous>, transform_indices = @transform_0, window_bounds = array<i64: 16, 32>}, {transform_indices = @transform_1, window_bounds = array<i64: 32, 128>}, {transform_indices = @transform_2, window_bounds = array<i64: 16, 128>}]} {
    %c0 = arith.constant 0 : index
    %c0_0 = arith.constant 0 : index
    %0 = vector.load %arg1[%c0, %c0_0] : memref<16x32xbf16, #tpu.memory_space<vmem>>, vector<16x32xbf16>
    %c0_1 = arith.constant 0 : index
    %c0_2 = arith.constant 0 : index
    %1 = vector.load %arg2[%c0_1, %c0_2] : memref<32x128xbf16, #tpu.memory_space<vmem>>, vector<32x128xbf16>
    %cst = arith.constant dense<0.000000e+00> : vector<16x128xf32>
    %2 = tpu.matmul %0, %1, %cst {dimension_numbers = #tpu.dot_dimension_numbers<[1], [0], [0], [1], [0, 0, 1, 1], [], []>} : vector<16x32xbf16>, vector<32x128xbf16>, vector<16x128xf32> -> vector<16x128xf32>
    %c0_3 = arith.constant 0 : index
    %c0_4 = arith.constant 0 : index
    %3 = vector.load %arg3[%c0_3, %c0_4] : memref<16x128xf32, #tpu.memory_space<vmem>>, vector<16x128xf32>
    tpu.vector_store %arg3[%c0_3, %c0_4], %2 {strides = array<i32>} : memref<16x128xf32, #tpu.memory_space<vmem>>, vector<16x128xf32>,
    return
  }
  func.func @transform_0(%arg0: i32) -> (i32, i32) {
    %c0_i32 = arith.constant 0 : i32
    %c0_i32_0 = arith.constant 0 : i32
    %c0_i32_1 = arith.constant 0 : i32
    return %c0_i32, %c0_i32_0 : i32, i32
  }
  func.func @transform_1(%arg0: i32) -> (i32, i32) {
    %c0_i32 = arith.constant 0 : i32
    %c0_i32_0 = arith.constant 0 : i32
    return %c0_i32, %arg0 : i32, i32
  }
  func.func @transform_2(%arg0: i32) -> (i32, i32) {
    %c0_i32 = arith.constant 0 : i32
    %c0_i32_0 = arith.constant 0 : i32
    return %c0_i32, %arg0 : i32, i32
  }
}

</mosaic_0001>

<llo_original>
// kernel: tpu_custom_call.1
$region0: #{tpu_custom_call.1}
  #allocation0 [shape = 'u32[]', space=smem, size = 0x4, offset = 0x4, fixed_abs, tag = 'smem constant byte address 0x4 - core index']
  #allocation1 [shape = 'u32[144,128]{1,0:T(1,128)}', space=vmem, size = 0x12000, scoped, tag = 'internal scratch']
  %s0 = inlined_call_operand.hbm [shape: bf16[16,32], index: 0, kind: input, shape index: {}]
  %s1 = inlined_call_operand.hbm [shape: bf16[32,128], index: 1, kind: input, shape index: {}]
  %s2 = inlined_call_operand.hbm [shape: f32[16,128], index: 2, kind: output, shape index: {}]
  %s3 = sld [smem:[#allocation0]]
  $region26: #{tpu_custom_call.1} parent=0
    _
  %s5 = ssub.s32 1, %s3
  %s6 = scalar_select 0, %s5, %s3
  $region1: #{tpu_custom_call.1} parent=0
    #allocation2 [shape = 'u8[4096]{0}', space=vmem, size = 0x1000, scoped, tag = 'input window, operand 0, single buffered']
    #allocation3 [shape = 's32[1]{0}', space=sflag, size = 0x4, scoped, tag = 'scoped memory for tpu_custom_call.1']
    #allocation4 [shape = 's32[1]{0}', space=sflag, size = 0x4, scoped, tag = 'scoped memory for tpu_custom_call.1']
    #allocation5 [shape = 'u8[8192]{0}', space=vmem, size = 0x2000, scoped, tag = 'input window, operand 1, single buffered']
    #allocation6 [shape = 's32[1]{0}', space=sflag, size = 0x4, scoped, tag = 'scoped memory for tpu_custom_call.1']
    #allocation7 [shape = 'u8[8192]{0}', space=vmem, size = 0x2000, scoped, tag = 'output window, operand 0, single buffered']
    %7 = vsyncpa [#allocation3], 0
    %8 = vsyncpa [#allocation6], 0
    %9 = vsyncpa [#allocation4], 0
    // Predicated region
    $region2: #{tpu_custom_call.1} parent=1 // pred_check
      _
    $region3: #{tpu_custom_call.1} parent=1 // pred_check_branch
      %11 = sbr.rel (0) target = $region5
    $region4: #{tpu_custom_call.1} parent=1 // pred_region
      %s13 = ssub.s32 128, 128
      %14 = vsyncadd [#allocation3], %s13
      %s15 = sshll.u32 [#allocation2], 4
      %s16 = int_to_ptr.vmem [resolvable:$true] %s15
      %21 = dma.hbm_to_vmem [thread:$0]  %s0, 128, %s16, [#allocation3], 64, 64, 4
    $region5: #{tpu_custom_call.1} parent=1 // pred_fallthru
      _
    // Predicated region
    $region6: #{tpu_custom_call.1} parent=1 // pred_check
      _
    $region7: #{tpu_custom_call.1} parent=1 // pred_check_branch
      %23 = sbr.rel (0) target = $region9
    $region8: #{tpu_custom_call.1} parent=1 // pred_region
      %s25 = ssub.s32 256, 256
      %26 = vsyncadd [#allocation6], %s25
      %s27 = sshll.u32 [#allocation5], 4
      %s28 = int_to_ptr.vmem [resolvable:$true] %s27
      %33 = dma.hbm_to_vmem [thread:$0]  %s1, 256, %s28, [#allocation6], 64, 64, 4
    $region9: #{tpu_custom_call.1} parent=1 // pred_fallthru
      _
    // Predicated region
    $region10: #{tpu_custom_call.1} parent=1 // pred_check
      _
    $region11: #{tpu_custom_call.1} parent=1 // pred_check_branch
      %35 = sbr.rel (0) target = $region13
    $region12: #{tpu_custom_call.1} parent=1 // pred_region
      %36 = dma.done [#allocation3], 128
    $region13: #{tpu_custom_call.1} parent=1 // pred_fallthru
      _
    // Predicated region
    $region14: #{tpu_custom_call.1} parent=1 // pred_check
      _
    $region15: #{tpu_custom_call.1} parent=1 // pred_check_branch
      %38 = sbr.rel (0) target = $region17
    $region16: #{tpu_custom_call.1} parent=1 // pred_region
      %39 = dma.done [#allocation6], 256
    $region17: #{tpu_custom_call.1} parent=1 // pred_fallthru
      _
    %v41 = vld [vmem:[#allocation2] sm:$0xf]
    %v42 = vld [vmem:[#allocation2 + $0x4] sm:$0xf]
    %v43 = vld [vmem:[#allocation5] sm:$0xf]
    %v44 = vld [vmem:[#allocation5 + $0x4] sm:$0xf]
    %v45 = vld [vmem:[#allocation5 + $0x8] sm:$0xf]
    %v46 = vld [vmem:[#allocation5 + $0xc] sm:$0xf]
    %v49 = vunpack.c.l.b16 %v41
    %v50 = vunpack.c.l.b16 %v42
    %v51 = vpack.c.b16 %v50, %v49
    %v56 = vunpack.c.l.b16 %v43
    %v57 = vunpack.c.l.b16 %v44
    %v58 = vunpack.c.l.b16 %v45
    %v59 = vunpack.c.l.b16 %v46
    %v60 = vpack.c.b16 %v57, %v56
    %v61 = vpack.c.b16 %v59, %v58
    %vm64 = vcmask 261120
    %v66 = vsel %vm64, %v51, 0
    %68 = vmatprep.subr.bf16.mxu0 0
    %69 = vmatpush1.bf16.msra.mxu0 0
    %70 = vmatprep.subr.bf16.mxu0 0
    %71 = vmatpush1.bf16.msra.mxu0 0
    %72 = vmatprep.subr.bf16.mxu0 0
    %73 = vmatpush1.bf16.msra.mxu0 0
    %74 = vmatprep.subr.bf16.mxu0 0
    %75 = vmatpush1.bf16.msra.mxu0 0
    %76 = vmatprep.subr.bf16.mxu0 0
    %77 = vmatpush1.bf16.msra.mxu0 0
    %78 = vmatprep.subr.bf16.mxu0 0
    %79 = vmatpush1.bf16.msra.mxu0 0
    %80 = vmatprep.subr.bf16.mxu0 0
    %81 = vmatpush1.bf16.msra.mxu0 %v61
    %82 = vmatprep.subr.bf16.mxu0 0
    %83 = vmatpush1.bf16.msra.mxu0 %v60
    %84 = vmatprep.subr.bf16.mxu0 0
    %85 = vmatpush2.bf16.msra.mxu0 0
    %86 = vmatprep.subr.bf16.mxu0 0
    %87 = vmatpush2.bf16.msra.mxu0 0
    %88 = vmatprep.subr.bf16.mxu0 0
    %89 = vmatpush2.bf16.msra.mxu0 0
    %90 = vmatprep.subr.bf16.mxu0 0
    %91 = vmatpush2.bf16.msra.mxu0 0
    %92 = vmatprep.subr.bf16.mxu0 0
    %93 = vmatpush2.bf16.msra.mxu0 0
    %94 = vmatprep.subr.bf16.mxu0 0
    %95 = vmatpush2.bf16.msra.mxu0 0
    %96 = vmatprep.subr.bf16.mxu0 0
    %97 = vmatpush2.bf16.msra.mxu0 0
    %98 = vmatprep.subr.bf16.mxu0 0
    %99 = vmatpush2.bf16.msra.mxu0 0
    %100 = vmatprep.mubr.bf16.mxu0 0
    %101 = vmatmul.mubr.bf16.gmra.mxu0 %v66
    %v102 = vpop.f32.mrf.mxu0
    %v103 = vadd.f32 0.0, %v102
    %v104 = vpop.f32.mrf.mxu0
    %v105 = vpop.f32.mrf.mxu0
    %v106 = vadd.f32 0.0, %v105
    %v107 = vpop.f32.mrf.mxu0
    %108 = vdwg.mxu0
    %109 = vst [vmem:[#allocation7] sm:$0xff] %v103
    %110 = vst [vmem:[#allocation7 + $0x8] sm:$0xff] %v106
    // Predicated region
    $region18: #{tpu_custom_call.1} parent=1 // pred_check
      _
    $region19: #{tpu_custom_call.1} parent=1 // pred_check_branch
      %112 = sbr.rel (0) target = $region21
    $region20: #{tpu_custom_call.1} parent=1 // pred_region
      %s114 = ssub.s32 256, 256
      %115 = vsyncadd [#allocation4], %s114
      %s116 = sshll.u32 [#allocation7], 4
      %s117 = int_to_ptr.vmem [resolvable:$true] %s116
      %122 = dma.vmem_to_hbm [thread:$0]  %s117, 256, %s2, [#allocation4], 128, 128, 8
    $region21: #{tpu_custom_call.1} parent=1 // pred_fallthru
      _
    // Predicated region
    $region22: #{tpu_custom_call.1} parent=1 // pred_check
      _
    $region23: #{tpu_custom_call.1} parent=1 // pred_check_branch
      %124 = sbr.rel (0) target = $region25
    $region24: #{tpu_custom_call.1} parent=1 // pred_region
      %125 = dma.done [#allocation4], 256
    $region25: #{tpu_custom_call.1} parent=1 // pred_fallthru
      _
    %126 = vsyncpa [#allocation3], 1
    %127 = vsyncpa [#allocation6], 1
    %128 = vsyncpa [#allocation4], 1

</llo_original>
